<compile_context>
chip_gen: v7x
topology: tpu7x:2x2x1
jax: 0.10.0
libtpu: 0.0.40
codegen_flags: <defaults>
</compile_context>

<pallas_src>
import functools

import jax
import jax.numpy as jnp
from jax.experimental import pallas as pl
from jax.experimental.pallas import tpu as pltpu


def _round_up(n, m):
    return ((n + m - 1) // m) * m


def _mme_linear_kernel(x_ref, w_ref, o_ref, *, inv_tmp):
    # x_ref: (TM, D)   w_ref: (D, C)   o_ref: (TM, C)
    # Cast activations to the prepared weight dtype (bf16 by default) so the
    # MXU runs at full rate; accumulate in f32; fuse the 1/tmp scale.
    x = x_ref[...].astype(w_ref.dtype)
    acc = jnp.dot(x, w_ref[...], preferred_element_type=jnp.float32)
    o_ref[...] = (acc * inv_tmp).astype(o_ref.dtype)


def prepare_mme_weight(weight, compute_dtype=jnp.bfloat16):
    """One-time (model-load) prep of the classifier weight.

    weight: (C, D) -- PyTorch nn.Linear layout (num_classes, out_dim)
    returns (D, C) tensor in `compute_dtype`, ready to be kept resident in
    VMEM by the kernel. Do NOT call this per forward pass.
    """
    return jnp.asarray(weight).T.astype(compute_dtype)


def _pick_tile_m(B, D, C, x_itemsize, w_itemsize, out_itemsize, block_m,
                 vmem_budget_bytes=24 * 1024 * 1024):
    """Largest batch tile that (a) covers B, (b) fits the VMEM budget."""
    tm = min(block_m, _round_up(B, 8))
    # Streaming footprint per row: x and out tiles are double-buffered by the
    # default pipeline; the resident W also gets 2 buffers by default.
    per_row = 2 * (D * x_itemsize + C * out_itemsize)
    resident_w = 2 * D * C * w_itemsize
    avail = max(vmem_budget_bytes - resident_w, per_row * 8)
    tm_cap = max(8, (avail // per_row) // 8 * 8)
    return max(8, min(tm, int(tm_cap)))


def res_classifier_mme_forward(x, w_t, tmp=0.02, *, block_m=1024):
    """ResClassifier_MME forward.

    x:   (B, D) features (D = configs.out_dim), f32 or bf16.
    w_t: (D, C) prepared weight from prepare_mme_weight().
    returns (B, C) float32 logits = (x @ W^T) / tmp
    """
    B, D = x.shape
    Dw, C = w_t.shape
    assert D == Dw, f"feature dim mismatch: x has {D}, weight has {Dw}"

    tm = _pick_tile_m(
        B, D, C,
        x_itemsize=jnp.dtype(x.dtype).itemsize,
        w_itemsize=jnp.dtype(w_t.dtype).itemsize,
        out_itemsize=4,
        block_m=block_m,
    )
    grid_m = pl.cdiv(B, tm)

    cost = pl.CostEstimate(
        flops=2 * B * D * C,
        transcendentals=0,
        bytes_accessed=(jnp.dtype(x.dtype).itemsize * B * D
                        + jnp.dtype(w_t.dtype).itemsize * D * C
                        + 4 * B * C),
    )

    out = pl.pallas_call(
        functools.partial(_mme_linear_kernel, inv_tmp=float(1.0 / tmp)),
        out_shape=jax.ShapeDtypeStruct((B, C), jnp.float32),
        grid_spec=pltpu.PrefetchScalarGridSpec(
            num_scalar_prefetch=0,
            grid=(grid_m,),
            in_specs=[
                # x tiles stream over the batch axis (double-buffered).
                pl.BlockSpec((tm, D), lambda i: (i, 0)),
                # weight stays resident (same block index every step).
                pl.BlockSpec((D, C), lambda i: (0, 0)),
            ],
            # Last dim == full array dim, so no class-dim padding and no
            # post-kernel slice/copy of the logits.
            out_specs=pl.BlockSpec((tm, C), lambda i: (i, 0)),
        ),
        compiler_params=pltpu.CompilerParams(
            # Batch axis is embarrassingly parallel -> megacore sharding on
            # v7x once grid_m >= 2.
            dimension_semantics=("parallel",),
        ),
        cost_estimate=cost,
    )(x, w_t)

    return out


def init_weight(key, in_dim, num_classes, dtype=jnp.float32):
    # Mirror ResClassifier_MME.weights_init(): N(0, 0.1), PyTorch layout (C, D).
    return 0.1 * jax.random.normal(key, (num_classes, in_dim), dtype)


if __name__ == "__main__":
    # Small config consistent with the module:
    #   configs.out_dim = 128, configs.num_classes = 5, batch = 8
    batch = 8
    out_dim = 128
    num_classes = 5
    tmp = 0.02

    key = jax.random.PRNGKey(0)
    kx, kw = jax.random.split(key)
    x = jax.random.normal(kx, (batch, out_dim), dtype=jnp.float32)
    weight = init_weight(kw, out_dim, num_classes)          # (C, D), f32

    # Model-load-time prep (transpose + bf16 cast), done once, not per call.
    w_t = prepare_mme_weight(weight)                         # (D, C), bf16

    out = res_classifier_mme_forward(x, w_t, tmp)
    out = jax.block_until_ready(out)

    # Sanity check vs. plain f32 JAX reference of the PyTorch forward.
    # bf16 inputs with f32 accumulation -> loosen tolerance accordingly.
    ref = (x @ weight.T) / jnp.float32(tmp)
    assert out.shape == (batch, num_classes)
    assert out.dtype == jnp.float32
    assert jnp.allclose(out, ref, rtol=2e-2, atol=1.0), (
        f"max abs err {jnp.max(jnp.abs(out - ref))}")

    print("KERNEL_OK")
</pallas_src>

<mosaic_0001>
module attributes {stable_mosaic.version = 11 : i64} {
  func.func @_mme_linear_kernel(%arg0: i32, %arg1: memref<8x128xf32, #tpu.memory_space<vmem>>, %arg2: memref<128x5xbf16, #tpu.memory_space<vmem>>, %arg3: memref<8x5xf32, #tpu.memory_space<vmem>>) attributes {dimension_semantics = [#tpu.dimension_semantics<parallel>], iteration_bounds = array<i64: 1>, scalar_prefetch = 0 : i64, scratch_operands = 0 : i64, tpu.core_type = #tpu.core_type<tc>, window_params = [{transform_indices = @transform_0, window_bounds = array<i64: 8, 128>}, {pipeline_mode = #tpu.pipeline_mode<synchronous>, transform_indices = @transform_1, window_bounds = array<i64: 128, 5>}, {transform_indices = @transform_2, window_bounds = array<i64: 8, 5>}]} {
    %c0 = arith.constant 0 : index
    %c0_0 = arith.constant 0 : index
    %0 = vector.load %arg1[%c0, %c0_0] : memref<8x128xf32, #tpu.memory_space<vmem>>, vector<8x128xf32>
    %1 = arith.truncf %0 : vector<8x128xf32> to vector<8x128xbf16>
    %c0_1 = arith.constant 0 : index
    %c0_2 = arith.constant 0 : index
    %2 = vector.load %arg2[%c0_1, %c0_2] : memref<128x5xbf16, #tpu.memory_space<vmem>>, vector<128x5xbf16>
    %cst = arith.constant dense<0.000000e+00> : vector<8x5xf32>
    %3 = tpu.matmul %1, %2, %cst {dimension_numbers = #tpu.dot_dimension_numbers<[1], [0], [0], [1], [0, 0, 1, 1], [], []>} : vector<8x128xbf16>, vector<128x5xbf16>, vector<8x5xf32> -> vector<8x5xf32>
    %cst_3 = arith.constant 5.000000e+01 : f32
    %4 = vector.broadcast %cst_3 : f32 to vector<8x5xf32>
    %5 = arith.mulf %3, %4 : vector<8x5xf32>
    %c0_4 = arith.constant 0 : index
    %c0_5 = arith.constant 0 : index
    %6 = vector.load %arg3[%c0_4, %c0_5] : memref<8x5xf32, #tpu.memory_space<vmem>>, vector<8x5xf32>
    tpu.vector_store %arg3[%c0_4, %c0_5], %5 {strides = array<i32>} : memref<8x5xf32, #tpu.memory_space<vmem>>, vector<8x5xf32>,
    return
  }
  func.func @transform_0(%arg0: i32) -> (i32, i32) {
    %c0_i32 = arith.constant 0 : i32
    %c0_i32_0 = arith.constant 0 : i32
    return %arg0, %c0_i32 : i32, i32
  }
  func.func @transform_1(%arg0: i32) -> (i32, i32) {
    %c0_i32 = arith.constant 0 : i32
    %c0_i32_0 = arith.constant 0 : i32
    %c0_i32_1 = arith.constant 0 : i32
    return %c0_i32, %c0_i32_0 : i32, i32
  }
  func.func @transform_2(%arg0: i32) -> (i32, i32) {
    %c0_i32 = arith.constant 0 : i32
    %c0_i32_0 = arith.constant 0 : i32
    return %arg0, %c0_i32 : i32, i32
  }
}

</mosaic_0001>

<llo_original>
// kernel: tpu_custom_call.1
$region0: #{tpu_custom_call.1}
  #allocation0 [shape = 'u32[]', space=smem, size = 0x4, offset = 0x4, fixed_abs, tag = 'smem constant byte address 0x4 - core index']
  #allocation1 [shape = 'u32[144,128]{1,0:T(1,128)}', space=vmem, size = 0x12000, scoped, tag = 'internal scratch']
  %s0 = inlined_call_operand.vmem [shape: f32[8,128], index: 0, kind: input, shape index: {}]
  %s1 = inlined_call_operand.vmem [shape: bf16[128,5], index: 1, kind: input, shape index: {}]
  %s2 = inlined_call_operand.hbm [shape: f32[8,5], index: 2, kind: output, shape index: {}]
  %s3 = sld [smem:[#allocation0]]
  $region18: #{tpu_custom_call.1} parent=0
    _
  %s5 = ssub.s32 1, %s3
  %s6 = scalar_select 0, %s5, %s3
  $region1: #{tpu_custom_call.1} parent=0
    #allocation2 [shape = 'u8[4096]{0}', space=vmem, size = 0x1000, scoped, tag = 'output window, operand 0, single buffered']
    #allocation3 [shape = 's32[1]{0}', space=sflag, size = 0x4, scoped, tag = 'scoped memory for tpu_custom_call.1']
    %7 = vsyncpa [#allocation3], 0
    // Predicated region
    $region2: #{tpu_custom_call.1} parent=1 // pred_check
      _
    $region3: #{tpu_custom_call.1} parent=1 // pred_check_branch
      %9 = sbr.rel (0) target = $region5
    $region4: #{tpu_custom_call.1} parent=1 // pred_region
      _
    $region5: #{tpu_custom_call.1} parent=1 // pred_fallthru
      _
    // Predicated region
    $region6: #{tpu_custom_call.1} parent=1 // pred_check
      _
    $region7: #{tpu_custom_call.1} parent=1 // pred_check_branch
      %11 = sbr.rel (0) target = $region9
    $region8: #{tpu_custom_call.1} parent=1 // pred_region
      _
    $region9: #{tpu_custom_call.1} parent=1 // pred_fallthru
      _
    %v13 = vld [vmem:[%s0] sm:$0xff]
    %v14 = vpack.c.bf16 %v13, %v13
    %v15 = vld [vmem:[%s1] sm:$0xf]
    %v16 = vld [vmem:[%s1 + $0x4] sm:$0xf]
    %v17 = vld [vmem:[%s1 + $0x8] sm:$0xf]
    %v18 = vld [vmem:[%s1 + $0xc] sm:$0xf]
    %v19 = vld [vmem:[%s1 + $0x10] sm:$0xf]
    %v20 = vld [vmem:[%s1 + $0x14] sm:$0xf]
    %v21 = vld [vmem:[%s1 + $0x18] sm:$0xf]
    %v22 = vld [vmem:[%s1 + $0x1c] sm:$0xf]
    %v23 = vld [vmem:[%s1 + $0x20] sm:$0xf]
    %v24 = vld [vmem:[%s1 + $0x24] sm:$0xf]
    %v25 = vld [vmem:[%s1 + $0x28] sm:$0xf]
    %v26 = vld [vmem:[%s1 + $0x2c] sm:$0xf]
    %v27 = vld [vmem:[%s1 + $0x30] sm:$0xf]
    %v28 = vld [vmem:[%s1 + $0x34] sm:$0xf]
    %v29 = vld [vmem:[%s1 + $0x38] sm:$0xf]
    %v30 = vld [vmem:[%s1 + $0x3c] sm:$0xf]
    %v47 = vunpack.c.l.b16 %v15
    %v48 = vunpack.c.l.b16 %v16
    %v49 = vunpack.c.l.b16 %v17
    %v50 = vunpack.c.l.b16 %v18
    %v51 = vunpack.c.l.b16 %v19
    %v52 = vunpack.c.l.b16 %v20
    %v53 = vunpack.c.l.b16 %v21
    %v54 = vunpack.c.l.b16 %v22
    %v55 = vunpack.c.l.b16 %v23
    %v56 = vunpack.c.l.b16 %v24
    %v57 = vunpack.c.l.b16 %v25
    %v58 = vunpack.c.l.b16 %v26
    %v59 = vunpack.c.l.b16 %v27
    %v60 = vunpack.c.l.b16 %v28
    %v61 = vunpack.c.l.b16 %v29
    %v62 = vunpack.c.l.b16 %v30
    %v63 = vpack.c.b16 %v48, %v47
    %v64 = vpack.c.b16 %v50, %v49
    %v65 = vpack.c.b16 %v52, %v51
    %v66 = vpack.c.b16 %v54, %v53
    %v67 = vpack.c.b16 %v56, %v55
    %v68 = vpack.c.b16 %v58, %v57
    %v69 = vpack.c.b16 %v60, %v59
    %v70 = vpack.c.b16 %v62, %v61
    %79 = vmatprep.subr.bf16.mxu0 0
    %80 = vmatpush1.bf16.msra.mxu0 %v63
    %81 = vmatprep.subr.bf16.mxu0 0
    %82 = vmatpush1.bf16.msra.mxu0 %v64
    %83 = vmatprep.subr.bf16.mxu0 0
    %84 = vmatpush1.bf16.msra.mxu0 %v65
    %85 = vmatprep.subr.bf16.mxu0 0
    %86 = vmatpush1.bf16.msra.mxu0 %v66
    %87 = vmatprep.subr.bf16.mxu0 0
    %88 = vmatpush1.bf16.msra.mxu0 %v67
    %89 = vmatprep.subr.bf16.mxu0 0
    %90 = vmatpush1.bf16.msra.mxu0 %v68
    %91 = vmatprep.subr.bf16.mxu0 0
    %92 = vmatpush1.bf16.msra.mxu0 %v69
    %93 = vmatprep.subr.bf16.mxu0 0
    %94 = vmatpush1.bf16.msra.mxu0 %v70
    %95 = vmatprep.subr.bf16.mxu0 0
    %96 = vmatpush1.bf16.msra.mxu0 0
    %97 = vmatprep.subr.bf16.mxu0 0
    %98 = vmatpush1.bf16.msra.mxu0 0
    %99 = vmatprep.subr.bf16.mxu0 0
    %100 = vmatpush1.bf16.msra.mxu0 0
    %101 = vmatprep.subr.bf16.mxu0 0
    %102 = vmatpush1.bf16.msra.mxu0 0
    %103 = vmatprep.subr.bf16.mxu0 0
    %104 = vmatpush1.bf16.msra.mxu0 0
    %105 = vmatprep.subr.bf16.mxu0 0
    %106 = vmatpush1.bf16.msra.mxu0 0
    %107 = vmatprep.subr.bf16.mxu0 0
    %108 = vmatpush1.bf16.msra.mxu0 0
    %109 = vmatprep.subr.bf16.mxu0 0
    %110 = vmatpush1.bf16.msra.mxu0 0
    %111 = vmatprep.mubr.bf16.mxu0 0
    %112 = vmatmul.mubr.bf16.gmra.mrb[0].mxu0 %v14
    %v113 = vpop.f32.mrb[0].mxu0
    %v114 = vadd.f32 0.0, %v113
    %v115 = vpop.f32.mrb[0].mxu0
    %v116 = vpop.f32.mrb[0].mxu0
    %v117 = vpop.f32.mrb[0].mxu0
    %118 = vdwg.mxu0
    %v119 = vmul.f32 %v114, 50.0
    %vm120 = vcmask 39936
    %121 = vst.msk [vmem:[#allocation2] sm:$0xff] %vm120, %v119
    // Predicated region
    $region10: #{tpu_custom_call.1} parent=1 // pred_check
      _
    $region11: #{tpu_custom_call.1} parent=1 // pred_check_branch
      %123 = sbr.rel (0) target = $region13
    $region12: #{tpu_custom_call.1} parent=1 // pred_region
      %s125 = ssub.s32 128, 128
      %126 = vsyncadd [#allocation3], %s125
      %s128 = sshll.u32 [#allocation2], 4
      %s129 = int_to_ptr.vmem [resolvable:$true] %s128
      %131 = dma.vmem_to_hbm [thread:$0]  %s129, 128, %s2, [#allocation3]
    $region13: #{tpu_custom_call.1} parent=1 // pred_fallthru
      _
    // Predicated region
    $region14: #{tpu_custom_call.1} parent=1 // pred_check
      _
    $region15: #{tpu_custom_call.1} parent=1 // pred_check_branch
      %133 = sbr.rel (0) target = $region17
    $region16: #{tpu_custom_call.1} parent=1 // pred_region
      %134 = dma.done [#allocation3], 128
    $region17: #{tpu_custom_call.1} parent=1 // pred_fallthru
      _
    %135 = vsyncpa [#allocation3], 1

</llo_original>
